<compile_context>
chip_gen: v7x
topology: tpu7x:2x2x1
jax: 0.10.0
libtpu: 0.0.40
codegen_flags: <defaults>
</compile_context>

<pallas_src>
import jax
import jax.numpy as jnp
from jax.experimental import pallas as pl
from jax.experimental.pallas import tpu as pltpu


def _linear_kernel(x_ref, w_ref, o_ref):
    # x_ref: (TB, F) VMEM tile; w_ref: (1, F) resident weight; o_ref: (TB, 1).
    x = x_ref[...]                                  # (TB, F)
    w = w_ref[...]                                  # (1, F) broadcasts over rows
    # VPU elementwise multiply + cross-lane (XLU) reduce; no MXU, no transpose.
    y = jnp.sum(x * w, axis=-1, keepdims=True)      # (TB, 1), f32
    o_ref[...] = y.astype(o_ref.dtype)


def linear_forward(x, weight, *, block_b=1024):
    """x: (B, F) f32, weight: (O, F) f32 (PyTorch nn.Linear layout) -> (B, O)."""
    B, F = x.shape
    O, Fw = weight.shape
    assert F == Fw
    assert O == 1, "kernel specialized to the module's out_features == 1"

    # Batch tile: a single full-array block for small B, otherwise a
    # 512-2048-row tile (multiple of 8) so block i+1 DMAs behind compute of i.
    tb = B if B <= block_b else block_b
    grid = (pl.cdiv(B, tb),)

    return pl.pallas_call(
        _linear_kernel,
        out_shape=jax.ShapeDtypeStruct((B, O), x.dtype),
        grid=grid,
        in_specs=[
            pl.BlockSpec((tb, F), lambda i: (i, 0)),   # batch-tiled activations
            pl.BlockSpec((O, F), lambda i: (0, 0)),    # weight resident across grid
        ],
        out_specs=pl.BlockSpec((tb, O), lambda i: (i, 0)),
        compiler_params=pltpu.CompilerParams(
            # Batch steps are independent -> shard across v7x's two TensorCores.
            dimension_semantics=("parallel",),
        ),
    )(x, weight)


if __name__ == "__main__":
    key = jax.random.PRNGKey(0)

    # Shapes implied by nn.Linear(3, 1): batch=8, in_features=3, out_features=1.
    B, F, O = 8, 3, 1
    x = jax.random.normal(key, (B, F), dtype=jnp.float32)

    # Module parameters: nn.init.constant_(weight, 0.0), bias=False.
    weight = jnp.zeros((O, F), dtype=jnp.float32)

    y = jax.block_until_ready(linear_forward(x, weight))
    y_ref = x @ weight.T
    assert y.shape == (B, O)
    assert jnp.allclose(y, y_ref, atol=1e-6), "mismatch vs reference (zero weight)"

    # Extra sanity check with a non-zero weight and a multi-block batch so the
    # grid path (resident weight + pipelined batch tiles) is actually exercised.
    k1, k2 = jax.random.split(key)
    x2 = jax.random.normal(k1, (1024, F), dtype=jnp.float32)
    w2 = jax.random.normal(k2, (O, F), dtype=jnp.float32)
    y2 = jax.block_until_ready(linear_forward(x2, w2, block_b=256))
    assert jnp.allclose(y2, x2 @ w2.T, atol=1e-5, rtol=1e-5), "mismatch vs reference"

    print("KERNEL_OK")
</pallas_src>

<mosaic_0001>
module attributes {stable_mosaic.version = 11 : i64} {
  func.func @_linear_kernel(%arg0: i32, %arg1: memref<8x3xf32, #tpu.memory_space<vmem>>, %arg2: memref<1x3xf32, #tpu.memory_space<vmem>>, %arg3: memref<8x1xf32, #tpu.memory_space<vmem>>) attributes {dimension_semantics = [#tpu.dimension_semantics<parallel>], iteration_bounds = array<i64: 1>, scalar_prefetch = 0 : i64, scratch_operands = 0 : i64, tpu.core_type = #tpu.core_type<tc>, window_params = [{transform_indices = @transform_0, window_bounds = array<i64: 8, 3>}, {pipeline_mode = #tpu.pipeline_mode<synchronous>, transform_indices = @transform_1, window_bounds = array<i64: 1, 3>}, {transform_indices = @transform_2, window_bounds = array<i64: 8, 1>}]} {
    %c0 = arith.constant 0 : index
    %c0_0 = arith.constant 0 : index
    %0 = vector.load %arg1[%c0, %c0_0] : memref<8x3xf32, #tpu.memory_space<vmem>>, vector<8x3xf32>
    %c0_1 = arith.constant 0 : index
    %c0_2 = arith.constant 0 : index
    %1 = vector.load %arg2[%c0_1, %c0_2] : memref<1x3xf32, #tpu.memory_space<vmem>>, vector<1x3xf32>
    %2 = vector.broadcast %1 : vector<1x3xf32> to vector<8x3xf32>
    %3 = arith.mulf %0, %2 : vector<8x3xf32>
    %cst = arith.constant dense<0.000000e+00> : vector<8xf32>
    %4 = vector.multi_reduction <add>, %3, %cst [1] : vector<8x3xf32> to vector<8xf32>
    %5 = vector.shape_cast %4 : vector<8xf32> to vector<8x1xf32>
    %c0_3 = arith.constant 0 : index
    %c0_4 = arith.constant 0 : index
    %6 = vector.load %arg3[%c0_3, %c0_4] : memref<8x1xf32, #tpu.memory_space<vmem>>, vector<8x1xf32>
    tpu.vector_store %arg3[%c0_3, %c0_4], %5 {strides = array<i32>} : memref<8x1xf32, #tpu.memory_space<vmem>>, vector<8x1xf32>,
    return
  }
  func.func @transform_0(%arg0: i32) -> (i32, i32) {
    %c0_i32 = arith.constant 0 : i32
    %c0_i32_0 = arith.constant 0 : i32
    return %arg0, %c0_i32 : i32, i32
  }
  func.func @transform_1(%arg0: i32) -> (i32, i32) {
    %c0_i32 = arith.constant 0 : i32
    %c0_i32_0 = arith.constant 0 : i32
    %c0_i32_1 = arith.constant 0 : i32
    return %c0_i32, %c0_i32_0 : i32, i32
  }
  func.func @transform_2(%arg0: i32) -> (i32, i32) {
    %c0_i32 = arith.constant 0 : i32
    %c0_i32_0 = arith.constant 0 : i32
    return %arg0, %c0_i32 : i32, i32
  }
}

</mosaic_0001>

<llo_original>
// kernel: tpu_custom_call.1
$region0: #{tpu_custom_call.1}
  #allocation0 [shape = 'u32[]', space=smem, size = 0x4, offset = 0x4, fixed_abs, tag = 'smem constant byte address 0x4 - core index']
  #allocation1 [shape = 'u32[144,128]{1,0:T(1,128)}', space=vmem, size = 0x12000, scoped, tag = 'internal scratch']
  %s0 = inlined_call_operand.vmem [shape: f32[8,3], index: 0, kind: input, shape index: {}]
  %s1 = inlined_call_operand.vmem [shape: f32[1,3], index: 1, kind: input, shape index: {}]
  %s2 = inlined_call_operand.vmem [shape: f32[8,1], index: 2, kind: output, shape index: {}]
  %s3 = sld [smem:[#allocation0]]
  $region18: #{tpu_custom_call.1} parent=0
    _
  %s5 = ssub.s32 1, %s3
  %s6 = scalar_select 0, %s5, %s3
  // Predicated region
  $region2: #{tpu_custom_call.1} parent=0 // pred_check
    _
  $region3: #{tpu_custom_call.1} parent=0 // pred_check_branch
    %8 = sbr.rel (0) target = $region5
  $region4: #{tpu_custom_call.1} parent=0 // pred_region
    _
  $region5: #{tpu_custom_call.1} parent=0 // pred_fallthru
    _
  // Predicated region
  $region6: #{tpu_custom_call.1} parent=0 // pred_check
    _
  $region7: #{tpu_custom_call.1} parent=0 // pred_check_branch
    %10 = sbr.rel (0) target = $region9
  $region8: #{tpu_custom_call.1} parent=0 // pred_region
    _
  $region9: #{tpu_custom_call.1} parent=0 // pred_fallthru
    _
  %v11 = vld [vmem:[%s0] sm:$0xff]
  %v12 = vld [vmem:[%s1] sm:$0x1]
  %v14 = vlaneseq
  %v15 = vshrl.u32 %v14, 7
  %v16 = vsub.s32 0, %v15
  %v17 = vrot.slane %v12, %v16
  %v19 = vmul.f32 %v11, %v17
  %vm20 = vcmask 23552
  %v21 = vsel %vm20, %v19, 0.0
  %22 = vadd.xlane.f32.xlu0 %v21
  %v23 = vpop.xlane.xlu0 %22
  %vm24 = vcmask 7168
  %25 = vst.msk [vmem:[%s2] sm:$0xff] %vm24, %v23
  // Predicated region
  $region10: #{tpu_custom_call.1} parent=0 // pred_check
    _
  $region11: #{tpu_custom_call.1} parent=0 // pred_check_branch
    %27 = sbr.rel (0) target = $region13
  $region12: #{tpu_custom_call.1} parent=0 // pred_region
    _
  $region13: #{tpu_custom_call.1} parent=0 // pred_fallthru
    _
  // Predicated region
  $region14: #{tpu_custom_call.1} parent=0 // pred_check
    _
  $region15: #{tpu_custom_call.1} parent=0 // pred_check_branch
    %29 = sbr.rel (0) target = $region17
  $region16: #{tpu_custom_call.1} parent=0 // pred_region
    _
  $region17: #{tpu_custom_call.1} parent=0 // pred_fallthru
    _

</llo_original>
